<compile_context>
chip_gen: v5e
topology: v5e:2x2
jax: 0.10.0
libtpu: 0.0.40
codegen_flags: <defaults>
</compile_context>

<pallas_src>
import jax
import jax.numpy as jnp
from jax import lax
from jax.experimental import pallas as pl
from jax.experimental.pallas import tpu as pltpu


def _block_kernel(f_ref, x_ref, wl_ref, blr_ref, blc_ref, wc_ref, bc_ref,
                  fo_ref, xo_ref):
    # f_ref  : (B, FS)       features, native layout (no wrapper transpose)
    # x_ref  : (B, Cin, HW)  image, channel-major, spatial flattened (HW on lanes)
    # wl_ref : (OC, FS)      linear weight (native PyTorch layout)
    # blr_ref: (1, OC)       linear bias as a row    (for the (B, OC) orientation)
    # blc_ref: (OC, 1)       linear bias as a column (for the (OC, B) orientation)
    # wc_ref : (OC, Cin)     1x1-conv weight (native PyTorch layout, squeezed)
    # bc_ref : (OC, 1)       conv bias (column)
    # fo_ref : (B, OC)       linear output (wrapper reshapes to (B, OC, 1, 1) for free)
    # xo_ref : (B, OC, HW)   ReLU(conv(x) + f), channel-major
    B, Cin, HW = x_ref.shape
    OC = wc_ref.shape[0]

    f = f_ref[...]
    wl = wl_ref[...]

    # ---- Linear path ------------------------------------------------------
    # Output orientation: f @ wl^T -> (B, OC), stored directly, so neither the
    # input f nor the output f_out needs a transpose in the wrapper (each tiny
    # wrapper transpose is a separate XLA launch that rivals the pallas_call).
    f_lin = lax.dot_general(f, wl,
                            dimension_numbers=(((1,), (1,)), ((), ())),
                            preferred_element_type=jnp.float32) + blr_ref[...]
    fo_ref[...] = f_lin.astype(fo_ref.dtype)

    # Epilogue orientation: wl @ f^T -> (OC, B), OC on sublanes so it broadcasts
    # against the (OC, HW) conv tiles.  Re-doing this ~1 KFLOP dot transposed is
    # cheaper and more robust than a lanes->sublanes relayout of f_lin, and the
    # MXU is essentially idle here anyway (K = FS = 32).
    col = lax.dot_general(wl, f,
                          dimension_numbers=(((1,), (1,)), ((), ())),
                          preferred_element_type=jnp.float32) \
        + blc_ref[...] + bc_ref[...]                                  # (OC, B)

    # ---- 1x1-conv path (VPU) ----------------------------------------------
    # K = Cin = 4: per-sample MXU dots would be >97% idle and latency-bound on
    # weight-push / result-FIFO-pop, so the conv is Cin broadcast-FMAs on the
    # VPU over lane-dense (OC, HW) tiles; stores are unmasked (HW % 128 == 0).
    wc = wc_ref[...]                                                   # hoisted
    x = x_ref[...]                                                     # hoisted
    for b in range(B):                                                 # unrolled
        y = wc[:, 0:1] * x[b, 0:1, :]                                  # (OC, HW)
        for c in range(1, Cin):                                        # unrolled
            y = y + wc[:, c:c + 1] * x[b, c:c + 1, :]
        # + (linear output + conv bias) column, ReLU, lane-dense store.
        xo_ref[b] = jnp.maximum(y + col[:, b:b + 1], 0.0).astype(xo_ref.dtype)


@jax.jit
def block_forward(x_nchw, f_in, conv_w, conv_b, lin_w, lin_b):
    """x_nchw: (B, Cin, H, W); f_in: (B, ...) flattened to (B, FS).

    Returns (x_out_nchw (B, OC, H, W), f_out (B, OC, 1, 1)) matching the
    PyTorch module's updated d['x'], d['f'].
    """
    B, Cin, H, W = x_nchw.shape
    HW = H * W
    f_flat = f_in.reshape(B, -1)
    FS = f_flat.shape[1]
    OC = conv_w.shape[0]

    # Keep HW (the lane axis) a multiple of 128 so the xo stores stay unmasked.
    # TODO(synk): pad HW up to a multiple of 128 in the wrapper for odd spatial sizes.
    assert HW % 128 == 0, "pad H*W to a multiple of 128 before calling the kernel"

    # Free reshape views / bitcasts only -- no activation transposes here.
    x_flat = x_nchw.reshape(B, Cin, HW)            # channel-major, HW on lanes
    wc = conv_w.reshape(OC, Cin)                   # native (OC, Cin)
    bc = conv_b.reshape(OC, 1)
    wl = lin_w                                     # native (OC, FS)
    bl_row = lin_b.reshape(1, OC)
    bl_col = lin_b.reshape(OC, 1)

    itemsize = 4  # f32 end-to-end at these shapes
    cost = pl.CostEstimate(
        flops=2 * B * (OC * Cin * HW + OC * FS),
        bytes_accessed=itemsize * (B * FS + B * Cin * HW + OC * FS + OC * Cin
                                   + 3 * OC + B * OC + B * OC * HW),
        transcendentals=0,
    )

    grid_spec = pltpu.PrefetchScalarGridSpec(
        num_scalar_prefetch=0,
        grid=(1,),                                  # whole problem fits in VMEM
        in_specs=[
            pl.BlockSpec((B, FS), lambda i: (0, 0)),
            pl.BlockSpec((B, Cin, HW), lambda i: (0, 0, 0)),
            pl.BlockSpec((OC, FS), lambda i: (0, 0)),
            pl.BlockSpec((1, OC), lambda i: (0, 0)),
            pl.BlockSpec((OC, 1), lambda i: (0, 0)),
            pl.BlockSpec((OC, Cin), lambda i: (0, 0)),
            pl.BlockSpec((OC, 1), lambda i: (0, 0)),
        ],
        out_specs=[
            pl.BlockSpec((B, OC), lambda i: (0, 0)),
            pl.BlockSpec((B, OC, HW), lambda i: (0, 0, 0)),
        ],
    )

    f_out_2d, x_out_flat = pl.pallas_call(
        _block_kernel,
        out_shape=(
            jax.ShapeDtypeStruct((B, OC), jnp.float32),
            jax.ShapeDtypeStruct((B, OC, HW), jnp.float32),
        ),
        grid_spec=grid_spec,
        compiler_params=pltpu.CompilerParams(
            dimension_semantics=("arbitrary",)),
        cost_estimate=cost,
    )(f_flat, x_flat, wl, bl_row, bl_col, wc, bc)

    x_out_nchw = x_out_flat.reshape(B, OC, H, W)   # free view
    f_out = f_out_2d.reshape(B, OC, 1, 1)          # free view (no transpose)
    return x_out_nchw, f_out


if __name__ == "__main__":
    # Small shapes consistent with the module
    B, Cin, H, W = 2, 4, 16, 16          # image_ch = 4
    FS = 32                              # feature_size
    OC = 8                               # out_ch

    key = jax.random.PRNGKey(0)
    kx, kf, kcw, kcb, klw, klb = jax.random.split(key, 6)

    x = jax.random.normal(kx, (B, Cin, H, W), dtype=jnp.float32)
    f = jax.random.normal(kf, (B, FS), dtype=jnp.float32)

    # Deterministic synthetic parameters (shapes match nn.Conv2d / nn.Linear)
    conv_w = 0.1 * jax.random.normal(kcw, (OC, Cin, 1, 1), dtype=jnp.float32)
    conv_b = 0.1 * jax.random.normal(kcb, (OC,), dtype=jnp.float32)
    lin_w = 0.1 * jax.random.normal(klw, (OC, FS), dtype=jnp.float32)
    lin_b = 0.1 * jax.random.normal(klb, (OC,), dtype=jnp.float32)

    x_out, f_out = block_forward(x, f, conv_w, conv_b, lin_w, lin_b)
    jax.block_until_ready(x_out)
    jax.block_until_ready(f_out)

    # Pure-JAX reference check
    f_ref = f.reshape(B, -1) @ lin_w.T + lin_b                       # (B, OC)
    conv_ref = jnp.einsum("bchw,oc->bohw", x, conv_w.reshape(OC, Cin)) \
        + conv_b.reshape(1, OC, 1, 1)
    x_ref = jnp.maximum(conv_ref + f_ref.reshape(B, OC, 1, 1), 0.0)

    assert x_out.shape == (B, OC, H, W)
    assert f_out.shape == (B, OC, 1, 1)
    assert jnp.allclose(x_out, x_ref, atol=1e-5, rtol=1e-5)
    assert jnp.allclose(f_out, f_ref.reshape(B, OC, 1, 1), atol=1e-5, rtol=1e-5)

    print("KERNEL_OK")
</pallas_src>

<mosaic_0001>
module attributes {stable_mosaic.version = 11 : i64} {
  func.func @_block_kernel(%arg0: i32, %arg1: memref<2x32xf32, #tpu.memory_space<vmem>>, %arg2: memref<2x4x256xf32, #tpu.memory_space<vmem>>, %arg3: memref<8x32xf32, #tpu.memory_space<vmem>>, %arg4: memref<1x8xf32, #tpu.memory_space<vmem>>, %arg5: memref<8x1xf32, #tpu.memory_space<vmem>>, %arg6: memref<8x4xf32, #tpu.memory_space<vmem>>, %arg7: memref<8x1xf32, #tpu.memory_space<vmem>>, %arg8: memref<2x8xf32, #tpu.memory_space<vmem>>, %arg9: memref<2x8x256xf32, #tpu.memory_space<vmem>>) attributes {dimension_semantics = [#tpu.dimension_semantics<arbitrary>], iteration_bounds = array<i64: 1>, scalar_prefetch = 0 : i64, scratch_operands = 0 : i64, tpu.core_type = #tpu.core_type<tc>, window_params = [{pipeline_mode = #tpu.pipeline_mode<synchronous>, transform_indices = @transform_0, window_bounds = array<i64: 2, 32>}, {pipeline_mode = #tpu.pipeline_mode<synchronous>, transform_indices = @transform_1, window_bounds = array<i64: 2, 4, 256>}, {pipeline_mode = #tpu.pipeline_mode<synchronous>, transform_indices = @transform_2, window_bounds = array<i64: 8, 32>}, {pipeline_mode = #tpu.pipeline_mode<synchronous>, transform_indices = @transform_3, window_bounds = array<i64: 1, 8>}, {pipeline_mode = #tpu.pipeline_mode<synchronous>, transform_indices = @transform_4, window_bounds = array<i64: 8, 1>}, {pipeline_mode = #tpu.pipeline_mode<synchronous>, transform_indices = @transform_5, window_bounds = array<i64: 8, 4>}, {pipeline_mode = #tpu.pipeline_mode<synchronous>, transform_indices = @transform_6, window_bounds = array<i64: 8, 1>}, {pipeline_mode = #tpu.pipeline_mode<synchronous>, transform_indices = @transform_7, window_bounds = array<i64: 2, 8>}, {pipeline_mode = #tpu.pipeline_mode<synchronous>, transform_indices = @transform_8, window_bounds = array<i64: 2, 8, 256>}]} {
    %c0 = arith.constant 0 : index
    %c0_0 = arith.constant 0 : index
    %0 = vector.load %arg1[%c0, %c0_0] : memref<2x32xf32, #tpu.memory_space<vmem>>, vector<2x32xf32>
    %c0_1 = arith.constant 0 : index
    %c0_2 = arith.constant 0 : index
    %1 = vector.load %arg3[%c0_1, %c0_2] : memref<8x32xf32, #tpu.memory_space<vmem>>, vector<8x32xf32>
    %cst = arith.constant dense<0.000000e+00> : vector<2x8xf32>
    %2 = tpu.matmul %0, %1, %cst {dimension_numbers = #tpu.dot_dimension_numbers<[1], [1], [0], [0], [0, 0, 1, 0], [], []>} : vector<2x32xf32>, vector<8x32xf32>, vector<2x8xf32> -> vector<2x8xf32>
    %c0_3 = arith.constant 0 : index
    %c0_4 = arith.constant 0 : index
    %3 = vector.load %arg4[%c0_3, %c0_4] : memref<1x8xf32, #tpu.memory_space<vmem>>, vector<1x8xf32>
    %4 = vector.broadcast %3 : vector<1x8xf32> to vector<2x8xf32>
    %5 = arith.addf %2, %4 : vector<2x8xf32>
    %c0_5 = arith.constant 0 : index
    %c0_6 = arith.constant 0 : index
    %6 = vector.load %arg8[%c0_5, %c0_6] : memref<2x8xf32, #tpu.memory_space<vmem>>, vector<2x8xf32>
    tpu.vector_store %arg8[%c0_5, %c0_6], %5 {strides = array<i32>} : memref<2x8xf32, #tpu.memory_space<vmem>>, vector<2x8xf32>,
    %cst_7 = arith.constant dense<0.000000e+00> : vector<8x2xf32>
    %7 = tpu.matmul %1, %0, %cst_7 {dimension_numbers = #tpu.dot_dimension_numbers<[1], [1], [0], [0], [0, 0, 1, 0], [], []>} : vector<8x32xf32>, vector<2x32xf32>, vector<8x2xf32> -> vector<8x2xf32>
    %c0_8 = arith.constant 0 : index
    %c0_9 = arith.constant 0 : index
    %8 = vector.load %arg5[%c0_8, %c0_9] : memref<8x1xf32, #tpu.memory_space<vmem>>, vector<8x1xf32>
    %9 = vector.broadcast %8 : vector<8x1xf32> to vector<8x2xf32>
    %10 = arith.addf %7, %9 : vector<8x2xf32>
    %c0_10 = arith.constant 0 : index
    %c0_11 = arith.constant 0 : index
    %11 = vector.load %arg7[%c0_10, %c0_11] : memref<8x1xf32, #tpu.memory_space<vmem>>, vector<8x1xf32>
    %12 = vector.broadcast %11 : vector<8x1xf32> to vector<8x2xf32>
    %13 = arith.addf %10, %12 : vector<8x2xf32>
    %c0_12 = arith.constant 0 : index
    %c0_13 = arith.constant 0 : index
    %14 = vector.load %arg6[%c0_12, %c0_13] : memref<8x4xf32, #tpu.memory_space<vmem>>, vector<8x4xf32>
    %c0_14 = arith.constant 0 : index
    %c0_15 = arith.constant 0 : index
    %c0_16 = arith.constant 0 : index
    %15 = vector.load %arg2[%c0_14, %c0_15, %c0_16] : memref<2x4x256xf32, #tpu.memory_space<vmem>>, vector<2x4x256xf32>
    %16 = vector.extract_strided_slice %14 {offsets = [0, 0], sizes = [8, 1], strides = [1, 1]} : vector<8x4xf32> to vector<8x1xf32>
    %17 = vector.extract_strided_slice %15 {offsets = [0, 0, 0], sizes = [1, 1, 256], strides = [1, 1, 1]} : vector<2x4x256xf32> to vector<1x1x256xf32>
    %18 = vector.shape_cast %17 : vector<1x1x256xf32> to vector<1x256xf32>
    %19 = vector.broadcast %16 : vector<8x1xf32> to vector<8x256xf32>
    %20 = vector.broadcast %18 : vector<1x256xf32> to vector<8x256xf32>
    %21 = arith.mulf %19, %20 : vector<8x256xf32>
    %22 = vector.extract_strided_slice %14 {offsets = [0, 1], sizes = [8, 1], strides = [1, 1]} : vector<8x4xf32> to vector<8x1xf32>
    %23 = vector.extract_strided_slice %15 {offsets = [0, 1, 0], sizes = [1, 1, 256], strides = [1, 1, 1]} : vector<2x4x256xf32> to vector<1x1x256xf32>
    %24 = vector.shape_cast %23 : vector<1x1x256xf32> to vector<1x256xf32>
    %25 = vector.broadcast %22 : vector<8x1xf32> to vector<8x256xf32>
    %26 = vector.broadcast %24 : vector<1x256xf32> to vector<8x256xf32>
    %27 = arith.mulf %25, %26 : vector<8x256xf32>
    %28 = arith.addf %21, %27 : vector<8x256xf32>
    %29 = vector.extract_strided_slice %14 {offsets = [0, 2], sizes = [8, 1], strides = [1, 1]} : vector<8x4xf32> to vector<8x1xf32>
    %30 = vector.extract_strided_slice %15 {offsets = [0, 2, 0], sizes = [1, 1, 256], strides = [1, 1, 1]} : vector<2x4x256xf32> to vector<1x1x256xf32>
    %31 = vector.shape_cast %30 : vector<1x1x256xf32> to vector<1x256xf32>
    %32 = vector.broadcast %29 : vector<8x1xf32> to vector<8x256xf32>
    %33 = vector.broadcast %31 : vector<1x256xf32> to vector<8x256xf32>
    %34 = arith.mulf %32, %33 : vector<8x256xf32>
    %35 = arith.addf %28, %34 : vector<8x256xf32>
    %36 = vector.extract_strided_slice %14 {offsets = [0, 3], sizes = [8, 1], strides = [1, 1]} : vector<8x4xf32> to vector<8x1xf32>
    %37 = vector.extract_strided_slice %15 {offsets = [0, 3, 0], sizes = [1, 1, 256], strides = [1, 1, 1]} : vector<2x4x256xf32> to vector<1x1x256xf32>
    %38 = vector.shape_cast %37 : vector<1x1x256xf32> to vector<1x256xf32>
    %39 = vector.broadcast %36 : vector<8x1xf32> to vector<8x256xf32>
    %40 = vector.broadcast %38 : vector<1x256xf32> to vector<8x256xf32>
    %41 = arith.mulf %39, %40 : vector<8x256xf32>
    %42 = arith.addf %35, %41 : vector<8x256xf32>
    %43 = vector.extract_strided_slice %13 {offsets = [0, 0], sizes = [8, 1], strides = [1, 1]} : vector<8x2xf32> to vector<8x1xf32>
    %44 = vector.broadcast %43 : vector<8x1xf32> to vector<8x256xf32>
    %45 = arith.addf %42, %44 : vector<8x256xf32>
    %cst_17 = arith.constant 0.000000e+00 : f32
    %46 = vector.broadcast %cst_17 : f32 to vector<8x256xf32>
    %47 = arith.maximumf %45, %46 : vector<8x256xf32>
    %c0_18 = arith.constant 0 : index
    %c0_19 = arith.constant 0 : index
    %c0_20 = arith.constant 0 : index
    %48 = vector.load %arg9[%c0_18, %c0_19, %c0_20] : memref<2x8x256xf32, #tpu.memory_space<vmem>>, vector<1x8x256xf32>
    %49 = vector.shape_cast %48 : vector<1x8x256xf32> to vector<8x256xf32>
    %50 = vector.shape_cast %47 : vector<8x256xf32> to vector<1x8x256xf32>
    tpu.vector_store %arg9[%c0_18, %c0_19, %c0_20], %50 {strides = array<i32>} : memref<2x8x256xf32, #tpu.memory_space<vmem>>, vector<1x8x256xf32>,
    %51 = vector.extract_strided_slice %14 {offsets = [0, 0], sizes = [8, 1], strides = [1, 1]} : vector<8x4xf32> to vector<8x1xf32>
    %52 = vector.extract_strided_slice %15 {offsets = [1, 0, 0], sizes = [1, 1, 256], strides = [1, 1, 1]} : vector<2x4x256xf32> to vector<1x1x256xf32>
    %53 = vector.shape_cast %52 : vector<1x1x256xf32> to vector<1x256xf32>
    %54 = vector.broadcast %51 : vector<8x1xf32> to vector<8x256xf32>
    %55 = vector.broadcast %53 : vector<1x256xf32> to vector<8x256xf32>
    %56 = arith.mulf %54, %55 : vector<8x256xf32>
    %57 = vector.extract_strided_slice %14 {offsets = [0, 1], sizes = [8, 1], strides = [1, 1]} : vector<8x4xf32> to vector<8x1xf32>
    %58 = vector.extract_strided_slice %15 {offsets = [1, 1, 0], sizes = [1, 1, 256], strides = [1, 1, 1]} : vector<2x4x256xf32> to vector<1x1x256xf32>
    %59 = vector.shape_cast %58 : vector<1x1x256xf32> to vector<1x256xf32>
    %60 = vector.broadcast %57 : vector<8x1xf32> to vector<8x256xf32>
    %61 = vector.broadcast %59 : vector<1x256xf32> to vector<8x256xf32>
    %62 = arith.mulf %60, %61 : vector<8x256xf32>
    %63 = arith.addf %56, %62 : vector<8x256xf32>
    %64 = vector.extract_strided_slice %14 {offsets = [0, 2], sizes = [8, 1], strides = [1, 1]} : vector<8x4xf32> to vector<8x1xf32>
    %65 = vector.extract_strided_slice %15 {offsets = [1, 2, 0], sizes = [1, 1, 256], strides = [1, 1, 1]} : vector<2x4x256xf32> to vector<1x1x256xf32>
    %66 = vector.shape_cast %65 : vector<1x1x256xf32> to vector<1x256xf32>
    %67 = vector.broadcast %64 : vector<8x1xf32> to vector<8x256xf32>
    %68 = vector.broadcast %66 : vector<1x256xf32> to vector<8x256xf32>
    %69 = arith.mulf %67, %68 : vector<8x256xf32>
    %70 = arith.addf %63, %69 : vector<8x256xf32>
    %71 = vector.extract_strided_slice %14 {offsets = [0, 3], sizes = [8, 1], strides = [1, 1]} : vector<8x4xf32> to vector<8x1xf32>
    %72 = vector.extract_strided_slice %15 {offsets = [1, 3, 0], sizes = [1, 1, 256], strides = [1, 1, 1]} : vector<2x4x256xf32> to vector<1x1x256xf32>
    %73 = vector.shape_cast %72 : vector<1x1x256xf32> to vector<1x256xf32>
    %74 = vector.broadcast %71 : vector<8x1xf32> to vector<8x256xf32>
    %75 = vector.broadcast %73 : vector<1x256xf32> to vector<8x256xf32>
    %76 = arith.mulf %74, %75 : vector<8x256xf32>
    %77 = arith.addf %70, %76 : vector<8x256xf32>
    %78 = vector.extract_strided_slice %13 {offsets = [0, 1], sizes = [8, 1], strides = [1, 1]} : vector<8x2xf32> to vector<8x1xf32>
    %79 = vector.broadcast %78 : vector<8x1xf32> to vector<8x256xf32>
    %80 = arith.addf %77, %79 : vector<8x256xf32>
    %cst_21 = arith.constant 0.000000e+00 : f32
    %81 = vector.broadcast %cst_21 : f32 to vector<8x256xf32>
    %82 = arith.maximumf %80, %81 : vector<8x256xf32>
    %c1 = arith.constant 1 : index
    %c0_22 = arith.constant 0 : index
    %c0_23 = arith.constant 0 : index
    %83 = vector.load %arg9[%c1, %c0_22, %c0_23] : memref<2x8x256xf32, #tpu.memory_space<vmem>>, vector<1x8x256xf32>
    %84 = vector.shape_cast %83 : vector<1x8x256xf32> to vector<8x256xf32>
    %85 = vector.shape_cast %82 : vector<8x256xf32> to vector<1x8x256xf32>
    tpu.vector_store %arg9[%c1, %c0_22, %c0_23], %85 {strides = array<i32>} : memref<2x8x256xf32, #tpu.memory_space<vmem>>, vector<1x8x256xf32>,
    return
  }
  func.func @transform_0(%arg0: i32) -> (i32, i32) {
    %c0_i32 = arith.constant 0 : i32
    %c0_i32_0 = arith.constant 0 : i32
    %c0_i32_1 = arith.constant 0 : i32
    return %c0_i32, %c0_i32_0 : i32, i32
  }
  func.func @transform_1(%arg0: i32) -> (i32, i32, i32) {
    %c0_i32 = arith.constant 0 : i32
    %c0_i32_0 = arith.constant 0 : i32
    %c0_i32_1 = arith.constant 0 : i32
    %c0_i32_2 = arith.constant 0 : i32
    return %c0_i32, %c0_i32_0, %c0_i32_1 : i32, i32, i32
  }
  func.func @transform_2(%arg0: i32) -> (i32, i32) {
    %c0_i32 = arith.constant 0 : i32
    %c0_i32_0 = arith.constant 0 : i32
    %c0_i32_1 = arith.constant 0 : i32
    return %c0_i32, %c0_i32_0 : i32, i32
  }
  func.func @transform_3(%arg0: i32) -> (i32, i32) {
    %c0_i32 = arith.constant 0 : i32
    %c0_i32_0 = arith.constant 0 : i32
    %c0_i32_1 = arith.constant 0 : i32
    return %c0_i32, %c0_i32_0 : i32, i32
  }
  func.func @transform_4(%arg0: i32) -> (i32, i32) {
    %c0_i32 = arith.constant 0 : i32
    %c0_i32_0 = arith.constant 0 : i32
    %c0_i32_1 = arith.constant 0 : i32
    return %c0_i32, %c0_i32_0 : i32, i32
  }
  func.func @transform_5(%arg0: i32) -> (i32, i32) {
    %c0_i32 = arith.constant 0 : i32
    %c0_i32_0 = arith.constant 0 : i32
    %c0_i32_1 = arith.constant 0 : i32
    return %c0_i32, %c0_i32_0 : i32, i32
  }
  func.func @transform_6(%arg0: i32) -> (i32, i32) {
    %c0_i32 = arith.constant 0 : i32
    %c0_i32_0 = arith.constant 0 : i32
    %c0_i32_1 = arith.constant 0 : i32
    return %c0_i32, %c0_i32_0 : i32, i32
  }
  func.func @transform_7(%arg0: i32) -> (i32, i32) {
    %c0_i32 = arith.constant 0 : i32
    %c0_i32_0 = arith.constant 0 : i32
    %c0_i32_1 = arith.constant 0 : i32
    return %c0_i32, %c0_i32_0 : i32, i32
  }
  func.func @transform_8(%arg0: i32) -> (i32, i32, i32) {
    %c0_i32 = arith.constant 0 : i32
    %c0_i32_0 = arith.constant 0 : i32
    %c0_i32_1 = arith.constant 0 : i32
    %c0_i32_2 = arith.constant 0 : i32
    return %c0_i32, %c0_i32_0, %c0_i32_1 : i32, i32, i32
  }
}

</mosaic_0001>

<llo_original>
// kernel: block_forward.1
$region0: #{block_forward.1}
  #allocation0 [shape = 'u32[]', space=smem, size = 0x4, offset = 0x4, fixed_abs, tag = 'smem constant byte address 0x4 - core index']
  #allocation1 [shape = 'u32[72,128]{1,0:T(1,128)}', space=vmem, size = 0x9000, scoped, tag = 'internal scratch']
  %s0 = inlined_call_operand.vmem [shape: f32[2,32], index: 0, kind: input, shape index: {}]
  %s1 = inlined_call_operand.vmem [shape: f32[2,4,256], index: 1, kind: input, shape index: {}]
  %s2 = inlined_call_operand.vmem [shape: f32[8,32], index: 2, kind: input, shape index: {}]
  %s3 = inlined_call_operand.vmem [shape: f32[1,8], index: 3, kind: input, shape index: {}]
  %s4 = inlined_call_operand.vmem [shape: f32[8,1], index: 4, kind: input, shape index: {}]
  %s5 = inlined_call_operand.vmem [shape: f32[8,4], index: 5, kind: input, shape index: {}]
  %s6 = inlined_call_operand.vmem [shape: f32[8,1], index: 6, kind: input, shape index: {}]
  %s7 = inlined_call_operand.hbm [shape: f32[2,8], index: 7, kind: output, shape index: {0}]
  %s8 = inlined_call_operand.vmem [shape: f32[2,8,256], index: 8, kind: output, shape index: {1}]
  %9 = xla_tuple %s7, %s8
  %s10 = sld [smem:[#allocation0]]
  $region46: #{block_forward.1} parent=0
    _
  %s12 = ssub.s32 1, %s10
  %s13 = scalar_select 0, %s12, %s10
  $region1: #{block_forward.1} parent=0
    #allocation2 [shape = 'u8[1024]{0}', space=vmem, size = 0x400, scoped, tag = 'output window, operand 0, single buffered']
    #allocation3 [shape = 's32[1]{0}', space=sflag, size = 0x4, scoped, tag = 'scoped memory for block_forward.1']
    %14 = vsyncpa [#allocation3], 0
    // Predicated region
    $region2: #{block_forward.1} parent=1 // pred_check
      _
    $region3: #{block_forward.1} parent=1 // pred_check_branch
      %16 = sbr.rel (0) target = $region5
    $region4: #{block_forward.1} parent=1 // pred_region
      _
    $region5: #{block_forward.1} parent=1 // pred_fallthru
      _
    // Predicated region
    $region6: #{block_forward.1} parent=1 // pred_check
      _
    $region7: #{block_forward.1} parent=1 // pred_check_branch
      %18 = sbr.rel (0) target = $region9
    $region8: #{block_forward.1} parent=1 // pred_region
      _
    $region9: #{block_forward.1} parent=1 // pred_fallthru
      _
    // Predicated region
    $region10: #{block_forward.1} parent=1 // pred_check
      _
    $region11: #{block_forward.1} parent=1 // pred_check_branch
      %20 = sbr.rel (0) target = $region13
    $region12: #{block_forward.1} parent=1 // pred_region
      _
    $region13: #{block_forward.1} parent=1 // pred_fallthru
      _
    // Predicated region
    $region14: #{block_forward.1} parent=1 // pred_check
      _
    $region15: #{block_forward.1} parent=1 // pred_check_branch
      %22 = sbr.rel (0) target = $region17
    $region16: #{block_forward.1} parent=1 // pred_region
      _
    $region17: #{block_forward.1} parent=1 // pred_fallthru
      _
    // Predicated region
    $region18: #{block_forward.1} parent=1 // pred_check
      _
    $region19: #{block_forward.1} parent=1 // pred_check_branch
      %24 = sbr.rel (0) target = $region21
    $region20: #{block_forward.1} parent=1 // pred_region
      _
    $region21: #{block_forward.1} parent=1 // pred_fallthru
      _
    // Predicated region
    $region22: #{block_forward.1} parent=1 // pred_check
      _
    $region23: #{block_forward.1} parent=1 // pred_check_branch
      %26 = sbr.rel (0) target = $region25
    $region24: #{block_forward.1} parent=1 // pred_region
      _
    $region25: #{block_forward.1} parent=1 // pred_fallthru
      _
    // Predicated region
    $region26: #{block_forward.1} parent=1 // pred_check
      _
    $region27: #{block_forward.1} parent=1 // pred_check_branch
      %28 = sbr.rel (0) target = $region29
    $region28: #{block_forward.1} parent=1 // pred_region
      _
    $region29: #{block_forward.1} parent=1 // pred_fallthru
      _
    %v29 = vld [vmem:[%s0] sm:$0x3]
    %v30 = vld [vmem:[%s2] sm:$0xff]
    %v31 = vld [vmem:[%s3] sm:$0x1]
    %v33 = vperm.slane %v31, 0
    %vm35 = vcmask 261120
    %v37 = vsel %vm35, %v29, 0
    %v40 = vsel %vm35, %v30, 0
    %42 = vmatpush.xpose.msra.mxu0 0.0
    %43 = vmatpush.xpose.msra.mxu0 0.0
    %44 = vmatpush.xpose.msra.mxu0 0.0
    %45 = vmatpush.xpose.msra.mxu0 0.0
    %46 = vmatpush.xpose.msra.mxu0 0.0
    %47 = vmatpush.xpose.msra.mxu0 0.0
    %48 = vmatpush.xpose.msra.mxu0 0.0
    %49 = vmatpush.xpose.msra.mxu0 0.0
    %50 = vmatpush.xpose.msra.mxu0 0.0
    %51 = vmatpush.xpose.msra.mxu0 0.0
    %52 = vmatpush.xpose.msra.mxu0 0.0
    %53 = vmatpush.xpose.msra.mxu0 0.0
    %54 = vmatpush.xpose.msra.mxu0 0.0
    %55 = vmatpush.xpose.msra.mxu0 0.0
    %56 = vmatpush.xpose.msra.mxu0 0.0
    %57 = vmatpush.xpose.msra.mxu0 %v40
    %58 = vmatmul.f32.gmra.mxu0 %v37
    %v59 = vpop.f32.mrf.mxu0
    %v60 = vadd.f32 %v33, %v59
    %61 = vdwg.mxu0
    %vm62 = vcmask 58368
    %63 = vst.msk [vmem:[#allocation2] sm:$0x3] %vm62, %v60
    %v64 = vld [vmem:[%s4] sm:$0xff]
    %66 = vset.pattern.permute.xlu0 0
    %67 = vperm.xlu0 %66, %v64
    %v68 = vpop.permute.xlu0 %67
    %70 = vmatpush.xpose.msra.mxu0 0.0
    %71 = vmatpush.xpose.msra.mxu0 0.0
    %72 = vmatpush.xpose.msra.mxu0 0.0
    %73 = vmatpush.xpose.msra.mxu0 0.0
    %74 = vmatpush.xpose.msra.mxu0 0.0
    %75 = vmatpush.xpose.msra.mxu0 0.0
    %76 = vmatpush.xpose.msra.mxu0 0.0
    %77 = vmatpush.xpose.msra.mxu0 0.0
    %78 = vmatpush.xpose.msra.mxu0 0.0
    %79 = vmatpush.xpose.msra.mxu0 0.0
    %80 = vmatpush.xpose.msra.mxu0 0.0
    %81 = vmatpush.xpose.msra.mxu0 0.0
    %82 = vmatpush.xpose.msra.mxu0 0.0
    %83 = vmatpush.xpose.msra.mxu0 0.0
    %84 = vmatpush.xpose.msra.mxu0 0.0
    %85 = vmatpush.xpose.msra.mxu0 %v37
    %86 = vmatmul.f32.gmra.mxu0 %v40
    %v87 = vpop.f32.mrf.mxu0
    %v88 = vadd.f32 %v68, %v87
    %89 = vdwg.mxu0
    %v90 = vld [vmem:[%s6] sm:$0xff]
    %92 = vset.pattern.permute.xlu0 0
    %93 = vperm.xlu0 %92, %v90
    %v94 = vpop.permute.xlu0 %93
    %v96 = vadd.f32 %v88, %v94
    %v97 = vld [vmem:[%s5] sm:$0xff]
    %v98 = vld [vmem:[%s1] sm:$0xff]
    %v99 = vld [vmem:[%s1 + $0x8] sm:$0xff]
    %101 = vset.pattern.permute.xlu0 0
    %102 = vperm.xlu0 %101, %v97
    %v103 = vpop.permute.xlu0 %102
    %v106 = vperm.slane %v98, 0
    %v107 = vperm.slane %v98, 4
    %v110 = vperm.slane %v106, 0
    %v111 = vperm.slane %v107, 0
    %v112 = vmul.f32 %v103, %v110
    %v113 = vmul.f32 %v103, %v111
    %114 = vset.pattern.permute.xlu0 1
    %115 = vperm.xlu0 %114, %v97
    %v116 = vpop.permute.xlu0 %115
    %v118 = vperm.slane %v98, 1
    %v119 = vperm.slane %v98, 5
    %v122 = vperm.slane %v118, 1
    %v123 = vperm.slane %v119, 1
    %v124 = vmul.f32 %v116, %v122
    %v125 = vmul.f32 %v116, %v123
    %v126 = vadd.f32 %v112, %v124
    %v127 = vadd.f32 %v113, %v125
    %128 = vset.pattern.permute.xlu0 2
    %129 = vperm.xlu0 %128, %v97
    %v130 = vpop.permute.xlu0 %129
    %v132 = vperm.slane %v98, 2
    %v133 = vperm.slane %v98, 6
    %v136 = vperm.slane %v132, 2
    %v137 = vperm.slane %v133, 2
    %v138 = vmul.f32 %v130, %v136
    %v139 = vmul.f32 %v130, %v137
    %v140 = vadd.f32 %v126, %v138
    %v141 = vadd.f32 %v127, %v139
    %142 = vset.pattern.permute.xlu0 3
    %143 = vperm.xlu0 %142, %v97
    %v144 = vpop.permute.xlu0 %143
    %v146 = vperm.slane %v98, 3
    %v147 = vperm.slane %v98, 7
    %v150 = vperm.slane %v146, 3
    %v151 = vperm.slane %v147, 3
    %v152 = vmul.f32 %v144, %v150
    %v153 = vmul.f32 %v144, %v151
    %v154 = vadd.f32 %v140, %v152
    %v155 = vadd.f32 %v141, %v153
    %157 = vset.pattern.permute.xlu0 0
    %158 = vperm.xlu0 %157, %v96
    %v159 = vpop.permute.xlu0 %158
    %v161 = vadd.f32 %v154, %v159
    %v162 = vadd.f32 %v155, %v159
    %v163 = vmax.f32 %v161, 0.0
    %v164 = vmax.f32 %v162, 0.0
    %165 = vst [vmem:[%s8] sm:$0xff] %v163
    %166 = vst [vmem:[%s8 + $0x8] sm:$0xff] %v164
    %v168 = vperm.slane %v99, 0
    %v169 = vperm.slane %v99, 4
    %v172 = vperm.slane %v168, 0
    %v173 = vperm.slane %v169, 0
    %v174 = vmul.f32 %v103, %v172
    %v175 = vmul.f32 %v103, %v173
    %v176 = vperm.slane %v99, 1
    %v177 = vperm.slane %v99, 5
    %v180 = vperm.slane %v176, 1
    %v181 = vperm.slane %v177, 1
    %v182 = vmul.f32 %v116, %v180
    %v183 = vmul.f32 %v116, %v181
    %v184 = vadd.f32 %v174, %v182
    %v185 = vadd.f32 %v175, %v183
    %v186 = vperm.slane %v99, 2
    %v187 = vperm.slane %v99, 6
    %v190 = vperm.slane %v186, 2
    %v191 = vperm.slane %v187, 2
    %v192 = vmul.f32 %v130, %v190
    %v193 = vmul.f32 %v130, %v191
    %v194 = vadd.f32 %v184, %v192
    %v195 = vadd.f32 %v185, %v193
    %v196 = vperm.slane %v99, 3
    %v197 = vperm.slane %v99, 7
    %v200 = vperm.slane %v196, 3
    %v201 = vperm.slane %v197, 3
    %v202 = vmul.f32 %v144, %v200
    %v203 = vmul.f32 %v144, %v201
    %v204 = vadd.f32 %v194, %v202
    %v205 = vadd.f32 %v195, %v203
    %206 = vset.pattern.permute.xlu0 1
    %207 = vperm.xlu0 %206, %v96
    %v208 = vpop.permute.xlu0 %207
    %v210 = vadd.f32 %v204, %v208
    %v211 = vadd.f32 %v205, %v208
    %v212 = vmax.f32 %v210, 0.0
    %v213 = vmax.f32 %v211, 0.0
    %s214 = scalar_lea.vmem %s8, 16
    %215 = vst [vmem:[%s214] sm:$0xff] %v212
    %216 = vst [vmem:[%s214 + $0x8] sm:$0xff] %v213
    // Predicated region
    $region30: #{block_forward.1} parent=1 // pred_check
      _
    $region31: #{block_forward.1} parent=1 // pred_check_branch
      %218 = sbr.rel (0) target = $region33
    $region32: #{block_forward.1} parent=1 // pred_region
      %220 = vsyncadd [#allocation3], 0
      %s222 = sshll.u32 [#allocation2], 4
      %s223 = int_to_ptr.vmem [resolvable:$true] %s222
      %s224 = sshll.u32 %s7, 4
      %s225 = int_to_ptr.hbm [resolvable:$true] %s224
      %227 = dma.vmem_to_hbm [thread:$0]  %s223, 32, %s225, [#allocation3]
    $region33: #{block_forward.1} parent=1 // pred_fallthru
      _
    // Predicated region
    $region34: #{block_forward.1} parent=1 // pred_check
      _
    $region35: #{block_forward.1} parent=1 // pred_check_branch
      %229 = sbr.rel (0) target = $region37
    $region36: #{block_forward.1} parent=1 // pred_region
      _
    $region37: #{block_forward.1} parent=1 // pred_fallthru
      _
    // Predicated region
    $region38: #{block_forward.1} parent=1 // pred_check
      _
    $region39: #{block_forward.1} parent=1 // pred_check_branch
      %231 = sbr.rel (0) target = $region41
    $region40: #{block_forward.1} parent=1 // pred_region
      %233 = dma.done [#allocation3], 32
    $region41: #{block_forward.1} parent=1 // pred_fallthru
      _
    // Predicated region
    $region42: #{block_forward.1} parent=1 // pred_check
      _
    $region43: #{block_forward.1} parent=1 // pred_check_branch
      %235 = sbr.rel (0) target = $region45
    $region44: #{block_forward.1} parent=1 // pred_region
      _
    $region45: #{block_forward.1} parent=1 // pred_fallthru
      _
    %236 = vsyncpa [#allocation3], 1

</llo_original>
